<compile_context>
chip_gen: v7x
topology: tpu7x:2x2x1
jax: 0.10.0
libtpu: 0.0.40
codegen_flags: <defaults>
</compile_context>

<pallas_src>
import functools

import jax
import jax.numpy as jnp
from jax import lax
from jax.experimental import pallas as pl
from jax.experimental.pallas import tpu as pltpu


def _residual_norm_kernel(seed_ref, x_ref, r_ref, g_ref, b_ref, o_ref, *,
                          eps: float, inv_hidden: float,
                          train_dropout: bool, keep_threshold: int,
                          keep_scale: float):
    # Fused: add -> LayerNorm(last dim, single-pass stats) -> optional dropout
    s = x_ref[...].astype(jnp.float32) + r_ref[...].astype(jnp.float32)

    row_sum = jnp.sum(s, axis=-1, keepdims=True)
    row_sumsq = jnp.sum(s * s, axis=-1, keepdims=True)
    mean = row_sum * inv_hidden
    var = jnp.maximum(row_sumsq * inv_hidden - mean * mean, 0.0)
    inv = lax.rsqrt(var + eps)

    y = (s - mean) * inv * g_ref[...].astype(jnp.float32) \
        + b_ref[...].astype(jnp.float32)

    if train_dropout:
        # Inverted dropout. Integer-domain threshold: keep iff bits >= p * 2^32.
        # Seed mixed with program_id so blocks get independent streams and the
        # result is order-independent (safe with "parallel" semantics).
        pltpu.prng_seed(seed_ref[0], pl.program_id(0))
        bits = pltpu.bitcast(pltpu.prng_random_bits(y.shape), jnp.uint32)
        y = jnp.where(bits >= jnp.uint32(keep_threshold), y * keep_scale, 0.0)

    o_ref[...] = y.astype(o_ref.dtype)


def _pick_tile_rows(rows: int, hidden: int, itemsize: int):
    """Pick the largest row tile that fits a conservative VMEM budget."""
    # sublane packing multiple: 8 rows for f32, 16 for bf16, 32 for int8/fp8
    pack = max(8, 32 // max(itemsize, 1))
    try:
        vmem_cap = pltpu.get_tpu_info().vmem_capacity_bytes
    except Exception:
        vmem_cap = 64 << 20  # v7x-sized fallback (also used under interpret)
    # Budget ~1/3 of VMEM, capped at 32 MiB (plenty to reach HBM roofline).
    budget = min(vmem_cap // 3, 32 << 20)
    # per-row bytes: double-buffered x, r, out (3 * 2 * itemsize) + f32 temps
    per_row = hidden * (6 * itemsize + 12)
    t = budget // max(per_row, 1)
    t = max(pack, min(1024, t))
    t = (t // pack) * pack
    rows_up = ((rows + pack - 1) // pack) * pack
    return min(t, rows_up), vmem_cap


def residual_norm(x, residual, gamma, beta, *, eps=1e-5, dropout_p=0.3,
                  train=False, seed=0, tile_rows=None):
    """x, residual: (..., hidden). Returns Dropout(LayerNorm(x + residual))."""
    orig_shape = x.shape
    hidden = orig_shape[-1]
    rows = 1
    for d in orig_shape[:-1]:
        rows *= d

    x2 = x.reshape(rows, hidden)
    r2 = residual.reshape(rows, hidden)
    g2 = gamma.reshape(1, hidden)
    b2 = beta.reshape(1, hidden)
    seed_arr = jnp.asarray([seed], dtype=jnp.int32)

    itemsize = jnp.dtype(x.dtype).itemsize
    auto_tile, vmem_cap = _pick_tile_rows(rows, hidden, itemsize)
    if tile_rows is None:
        tile_rows = auto_tile

    grid_n = pl.cdiv(rows, tile_rows)
    padded_rows = grid_n * tile_rows
    if padded_rows != rows:
        pad = padded_rows - rows
        x2 = jnp.pad(x2, ((0, pad), (0, 0)))
        r2 = jnp.pad(r2, ((0, pad), (0, 0)))

    # Explicit VMEM limit so large tiles aren't capped by the scoped default.
    tile_bytes = tile_rows * hidden * itemsize
    needed = 6 * tile_bytes + 4 * tile_rows * hidden * 4  # 2x-buf io + f32 temps
    vmem_limit = int(min(max(needed * 1.3, 32 << 20), vmem_cap * 0.9))

    train_dropout = bool(train) and dropout_p > 0.0
    keep_threshold = min(int(round(dropout_p * 4294967296.0)), 4294967295)
    keep_scale = 1.0 / (1.0 - dropout_p) if train_dropout else 1.0

    # TODO(synk): for hidden not a multiple of 128 the store is a masked
    # vst.msk; a lane-padded (+masked-stats) variant would be fully lane-dense.

    kernel = functools.partial(
        _residual_norm_kernel,
        eps=float(eps),
        inv_hidden=1.0 / float(hidden),
        train_dropout=train_dropout,
        keep_threshold=keep_threshold,
        keep_scale=float(keep_scale),
    )

    out = pl.pallas_call(
        kernel,
        out_shape=jax.ShapeDtypeStruct((padded_rows, hidden), x.dtype),
        grid_spec=pltpu.PrefetchScalarGridSpec(
            num_scalar_prefetch=1,                      # seed lands in SMEM
            grid=(grid_n,),
            in_specs=[
                pl.BlockSpec((tile_rows, hidden), lambda i, seed: (i, 0)),
                pl.BlockSpec((tile_rows, hidden), lambda i, seed: (i, 0)),
                pl.BlockSpec((1, hidden), lambda i, seed: (0, 0)),
                pl.BlockSpec((1, hidden), lambda i, seed: (0, 0)),
            ],
            out_specs=pl.BlockSpec((tile_rows, hidden), lambda i, seed: (i, 0)),
        ),
        compiler_params=pltpu.CompilerParams(
            dimension_semantics=("parallel",),          # order-independent blocks
            vmem_limit_bytes=vmem_limit,
        ),
    )(seed_arr, x2, r2, g2, b2)

    if padded_rows != rows:
        out = out[:rows]
    return out.reshape(orig_shape)


def _reference(x, residual, gamma, beta, eps=1e-5):
    s = (x + residual).astype(jnp.float32)
    mean = jnp.mean(s, axis=-1, keepdims=True)
    var = jnp.mean((s - mean) ** 2, axis=-1, keepdims=True)
    y = (s - mean) / jnp.sqrt(var + eps) * gamma + beta
    return y.astype(x.dtype)


if __name__ == "__main__":
    key = jax.random.PRNGKey(0)
    batch, seq, hidden = 2, 8, 32
    kx, kr, kg, kb = jax.random.split(key, 4)

    x = jax.random.normal(kx, (batch, seq, hidden), dtype=jnp.float32)
    residual = jax.random.normal(kr, (batch, seq, hidden), dtype=jnp.float32)
    # nn.LayerNorm default params are ones/zeros; use non-trivial deterministic
    # values to exercise the affine path.
    gamma = 1.0 + 0.1 * jax.random.normal(kg, (hidden,), dtype=jnp.float32)
    beta = 0.1 * jax.random.normal(kb, (hidden,), dtype=jnp.float32)

    # Eval mode (dropout is identity) -- deterministic, check against reference.
    out_eval = residual_norm(x, residual, gamma, beta, train=False)
    out_eval = jax.block_until_ready(out_eval)
    ref = _reference(x, residual, gamma, beta)
    assert jnp.allclose(out_eval, ref, atol=1e-5, rtol=1e-5), "mismatch vs reference"

    # Train mode uses the TPU hardware PRNG, which has no CPU/interpret
    # lowering -- only exercise it when actually running on TPU.
    if jax.default_backend() == "tpu":
        out_train = residual_norm(x, residual, gamma, beta, train=True,
                                  dropout_p=0.3, seed=1234)
        jax.block_until_ready(out_train)

    print("KERNEL_OK")
</pallas_src>

<mosaic_0001>
module attributes {stable_mosaic.version = 11 : i64} {
  func.func @_residual_norm_kernel(%arg0: i32, %arg1: memref<1xi32, #tpu.memory_space<smem>>, %arg2: memref<16x32xf32, #tpu.memory_space<vmem>>, %arg3: memref<16x32xf32, #tpu.memory_space<vmem>>, %arg4: memref<1x32xf32, #tpu.memory_space<vmem>>, %arg5: memref<1x32xf32, #tpu.memory_space<vmem>>, %arg6: memref<16x32xf32, #tpu.memory_space<vmem>>) attributes {dimension_semantics = [#tpu.dimension_semantics<parallel>], iteration_bounds = array<i64: 1>, scalar_prefetch = 1 : i64, scratch_operands = 0 : i64, tpu.core_type = #tpu.core_type<tc>, window_params = [{transform_indices = @transform_0, window_bounds = array<i64: 16, 32>}, {transform_indices = @transform_1, window_bounds = array<i64: 16, 32>}, {pipeline_mode = #tpu.pipeline_mode<synchronous>, transform_indices = @transform_2, window_bounds = array<i64: 1, 32>}, {pipeline_mode = #tpu.pipeline_mode<synchronous>, transform_indices = @transform_3, window_bounds = array<i64: 1, 32>}, {transform_indices = @transform_4, window_bounds = array<i64: 16, 32>}]} {
    %c0 = arith.constant 0 : index
    %c0_0 = arith.constant 0 : index
    %0 = vector.load %arg2[%c0, %c0_0] : memref<16x32xf32, #tpu.memory_space<vmem>>, vector<16x32xf32>
    %c0_1 = arith.constant 0 : index
    %c0_2 = arith.constant 0 : index
    %1 = vector.load %arg3[%c0_1, %c0_2] : memref<16x32xf32, #tpu.memory_space<vmem>>, vector<16x32xf32>
    %2 = arith.addf %0, %1 : vector<16x32xf32>
    %cst = arith.constant dense<0.000000e+00> : vector<16xf32>
    %3 = vector.multi_reduction <add>, %2, %cst [1] : vector<16x32xf32> to vector<16xf32>
    %4 = vector.shape_cast %3 : vector<16xf32> to vector<16x1xf32>
    %5 = arith.mulf %2, %2 : vector<16x32xf32>
    %cst_3 = arith.constant dense<0.000000e+00> : vector<16xf32>
    %6 = vector.multi_reduction <add>, %5, %cst_3 [1] : vector<16x32xf32> to vector<16xf32>
    %7 = vector.shape_cast %6 : vector<16xf32> to vector<16x1xf32>
    %cst_4 = arith.constant 3.125000e-02 : f32
    %8 = vector.broadcast %cst_4 : f32 to vector<16x1xf32>
    %9 = arith.mulf %4, %8 : vector<16x1xf32>
    %cst_5 = arith.constant 3.125000e-02 : f32
    %10 = vector.broadcast %cst_5 : f32 to vector<16x1xf32>
    %11 = arith.mulf %7, %10 : vector<16x1xf32>
    %12 = arith.mulf %9, %9 : vector<16x1xf32>
    %13 = arith.subf %11, %12 : vector<16x1xf32>
    %cst_6 = arith.constant 0.000000e+00 : f32
    %14 = vector.broadcast %cst_6 : f32 to vector<16x1xf32>
    %15 = arith.maximumf %13, %14 : vector<16x1xf32>
    %cst_7 = arith.constant 9.99999974E-6 : f32
    %16 = vector.broadcast %cst_7 : f32 to vector<16x1xf32>
    %17 = arith.addf %15, %16 : vector<16x1xf32>
    %18 = math.rsqrt %17 : vector<16x1xf32>
    %19 = vector.broadcast %9 : vector<16x1xf32> to vector<16x32xf32>
    %20 = arith.subf %2, %19 : vector<16x32xf32>
    %21 = vector.broadcast %18 : vector<16x1xf32> to vector<16x32xf32>
    %22 = arith.mulf %20, %21 : vector<16x32xf32>
    %c0_8 = arith.constant 0 : index
    %c0_9 = arith.constant 0 : index
    %23 = vector.load %arg4[%c0_8, %c0_9] : memref<1x32xf32, #tpu.memory_space<vmem>>, vector<1x32xf32>
    %24 = vector.broadcast %23 : vector<1x32xf32> to vector<16x32xf32>
    %25 = arith.mulf %22, %24 : vector<16x32xf32>
    %c0_10 = arith.constant 0 : index
    %c0_11 = arith.constant 0 : index
    %26 = vector.load %arg5[%c0_10, %c0_11] : memref<1x32xf32, #tpu.memory_space<vmem>>, vector<1x32xf32>
    %27 = vector.broadcast %26 : vector<1x32xf32> to vector<16x32xf32>
    %28 = arith.addf %25, %27 : vector<16x32xf32>
    %c0_12 = arith.constant 0 : index
    %c0_13 = arith.constant 0 : index
    %29 = vector.load %arg6[%c0_12, %c0_13] : memref<16x32xf32, #tpu.memory_space<vmem>>, vector<16x32xf32>
    tpu.vector_store %arg6[%c0_12, %c0_13], %28 {strides = array<i32>} : memref<16x32xf32, #tpu.memory_space<vmem>>, vector<16x32xf32>,
    return
  }
  func.func @transform_0(%arg0: i32, %arg1: memref<1xi32, #tpu.memory_space<smem>>) -> (i32, i32) {
    %c0_i32 = arith.constant 0 : i32
    %c0_i32_0 = arith.constant 0 : i32
    return %arg0, %c0_i32 : i32, i32
  }
  func.func @transform_1(%arg0: i32, %arg1: memref<1xi32, #tpu.memory_space<smem>>) -> (i32, i32) {
    %c0_i32 = arith.constant 0 : i32
    %c0_i32_0 = arith.constant 0 : i32
    return %arg0, %c0_i32 : i32, i32
  }
  func.func @transform_2(%arg0: i32, %arg1: memref<1xi32, #tpu.memory_space<smem>>) -> (i32, i32) {
    %c0_i32 = arith.constant 0 : i32
    %c0_i32_0 = arith.constant 0 : i32
    %c0_i32_1 = arith.constant 0 : i32
    return %c0_i32, %c0_i32_0 : i32, i32
  }
  func.func @transform_3(%arg0: i32, %arg1: memref<1xi32, #tpu.memory_space<smem>>) -> (i32, i32) {
    %c0_i32 = arith.constant 0 : i32
    %c0_i32_0 = arith.constant 0 : i32
    %c0_i32_1 = arith.constant 0 : i32
    return %c0_i32, %c0_i32_0 : i32, i32
  }
  func.func @transform_4(%arg0: i32, %arg1: memref<1xi32, #tpu.memory_space<smem>>) -> (i32, i32) {
    %c0_i32 = arith.constant 0 : i32
    %c0_i32_0 = arith.constant 0 : i32
    return %arg0, %c0_i32 : i32, i32
  }
}

</mosaic_0001>

<llo_original>
// kernel: tpu_custom_call.1
$region0: #{tpu_custom_call.1}
  #allocation0 [shape = 'u32[]', space=smem, size = 0x4, offset = 0x4, fixed_abs, tag = 'smem constant byte address 0x4 - core index']
  #allocation1 [shape = 'u32[144,128]{1,0:T(1,128)}', space=vmem, size = 0x12000, scoped, tag = 'internal scratch']
  #allocation2 [shape = 's32[1]{0}', space=sflag, size = 0x4, scoped, tag = 'scoped memory for tpu_custom_call.1']
  #allocation3 [shape = 's32[1]{0:T(128)S(6)}', space=smem, size = 0x200, scoped, tag = 'prefetched SMEM operand 0']
  %s0 = inlined_call_operand.<no memory space> [shape: s32[1], index: 0, kind: input, shape index: {}]
  %s1 = inlined_call_operand.hbm [shape: f32[16,32], index: 1, kind: input, shape index: {}]
  %s2 = inlined_call_operand.hbm [shape: f32[16,32], index: 2, kind: input, shape index: {}]
  %s3 = inlined_call_operand.vmem [shape: f32[1,32], index: 3, kind: input, shape index: {}]
  %s4 = inlined_call_operand.vmem [shape: f32[1,32], index: 4, kind: input, shape index: {}]
  %s5 = inlined_call_operand.hbm [shape: f32[16,32], index: 5, kind: output, shape index: {}]
  %s6 = sld [smem:[#allocation0]]
  $region34: #{tpu_custom_call.1} parent=0
    _
  %s8 = ssub.s32 1, %s6
  %s9 = scalar_select 0, %s8, %s6
  %10 = sst [smem:[#allocation3]] %s0
  $region1: #{tpu_custom_call.1} parent=0
    #allocation4 [shape = 'u8[8192]{0}', space=vmem, size = 0x2000, scoped, tag = 'input window, operand 1, single buffered']
    #allocation5 [shape = 's32[1]{0}', space=sflag, size = 0x4, scoped, tag = 'scoped memory for tpu_custom_call.1']
    #allocation6 [shape = 's32[1]{0}', space=sflag, size = 0x4, scoped, tag = 'scoped memory for tpu_custom_call.1']
    #allocation7 [shape = 'u8[8192]{0}', space=vmem, size = 0x2000, scoped, tag = 'input window, operand 2, single buffered']
    #allocation8 [shape = 's32[1]{0}', space=sflag, size = 0x4, scoped, tag = 'scoped memory for tpu_custom_call.1']
    #allocation9 [shape = 'u8[8192]{0}', space=vmem, size = 0x2000, scoped, tag = 'output window, operand 0, single buffered']
    %11 = vsyncpa [#allocation5], 0
    %12 = vsyncpa [#allocation8], 0
    %13 = vsyncpa [#allocation6], 0
    // Predicated region
    $region2: #{tpu_custom_call.1} parent=1 // pred_check
      _
    $region3: #{tpu_custom_call.1} parent=1 // pred_check_branch
      %15 = sbr.rel (0) target = $region5
    $region4: #{tpu_custom_call.1} parent=1 // pred_region
      %s17 = ssub.s32 256, 256
      %18 = vsyncadd [#allocation5], %s17
      %s19 = sshll.u32 [#allocation4], 4
      %s20 = int_to_ptr.vmem [resolvable:$true] %s19
      %25 = dma.hbm_to_vmem [thread:$0]  %s1, 256, %s20, [#allocation5], 128, 128, 8
    $region5: #{tpu_custom_call.1} parent=1 // pred_fallthru
      _
    // Predicated region
    $region6: #{tpu_custom_call.1} parent=1 // pred_check
      _
    $region7: #{tpu_custom_call.1} parent=1 // pred_check_branch
      %27 = sbr.rel (0) target = $region9
    $region8: #{tpu_custom_call.1} parent=1 // pred_region
      %s29 = ssub.s32 256, 256
      %30 = vsyncadd [#allocation8], %s29
      %s31 = sshll.u32 [#allocation7], 4
      %s32 = int_to_ptr.vmem [resolvable:$true] %s31
      %37 = dma.hbm_to_vmem [thread:$0]  %s2, 256, %s32, [#allocation8], 128, 128, 8
    $region9: #{tpu_custom_call.1} parent=1 // pred_fallthru
      _
    // Predicated region
    $region10: #{tpu_custom_call.1} parent=1 // pred_check
      _
    $region11: #{tpu_custom_call.1} parent=1 // pred_check_branch
      %39 = sbr.rel (0) target = $region13
    $region12: #{tpu_custom_call.1} parent=1 // pred_region
      _
    $region13: #{tpu_custom_call.1} parent=1 // pred_fallthru
      _
    // Predicated region
    $region14: #{tpu_custom_call.1} parent=1 // pred_check
      _
    $region15: #{tpu_custom_call.1} parent=1 // pred_check_branch
      %41 = sbr.rel (0) target = $region17
    $region16: #{tpu_custom_call.1} parent=1 // pred_region
      _
    $region17: #{tpu_custom_call.1} parent=1 // pred_fallthru
      _
    // Predicated region
    $region18: #{tpu_custom_call.1} parent=1 // pred_check
      _
    $region19: #{tpu_custom_call.1} parent=1 // pred_check_branch
      %43 = sbr.rel (0) target = $region21
    $region20: #{tpu_custom_call.1} parent=1 // pred_region
      %44 = dma.done [#allocation5], 256
    $region21: #{tpu_custom_call.1} parent=1 // pred_fallthru
      _
    // Predicated region
    $region22: #{tpu_custom_call.1} parent=1 // pred_check
      _
    $region23: #{tpu_custom_call.1} parent=1 // pred_check_branch
      %46 = sbr.rel (0) target = $region25
    $region24: #{tpu_custom_call.1} parent=1 // pred_region
      %47 = dma.done [#allocation8], 256
    $region25: #{tpu_custom_call.1} parent=1 // pred_fallthru
      _
    %v48 = vld [vmem:[#allocation4] sm:$0xff]
    %v49 = vld [vmem:[#allocation4 + $0x8] sm:$0xff]
    %v50 = vld [vmem:[#allocation7] sm:$0xff]
    %v51 = vld [vmem:[#allocation7 + $0x8] sm:$0xff]
    %v52 = vadd.f32 %v48, %v50
    %v53 = vadd.f32 %v49, %v51
    %vm54 = vcmask 261120
    %v55 = vsel %vm54, %v52, 0.0
    %56 = vadd.xlane.f32.xlu0 %v55
    %v57 = vpop.xlane.xlu0 %56
    %v58 = vsel %vm54, %v53, 0.0
    %59 = vadd.xlane.f32.xlu0 %v58
    %v60 = vpop.xlane.xlu0 %59
    %v61 = vmul.f32 %v52, %v52
    %v62 = vmul.f32 %v53, %v53
    %v63 = vsel %vm54, %v61, 0.0
    %64 = vadd.xlane.f32.xlu0 %v63
    %v65 = vpop.xlane.xlu0 %64
    %v66 = vsel %vm54, %v62, 0.0
    %67 = vadd.xlane.f32.xlu0 %v66
    %v68 = vpop.xlane.xlu0 %67
    %v69 = vmul.f32 %v57, 0.03125
    %v70 = vmul.f32 %v60, 0.03125
    %v71 = vmul.f32 %v65, 0.03125
    %v72 = vmul.f32 %v68, 0.03125
    %v73 = vmul.f32 %v69, %v69
    %v74 = vmul.f32 %v70, %v70
    %v75 = vsub.f32 %v71, %v73
    %v76 = vsub.f32 %v72, %v74
    %v77 = vmax.f32 %v75, 0.0
    %v78 = vmax.f32 %v76, 0.0
    %v79 = vadd.f32 %v77, 1e-05
    %v80 = vadd.f32 %v78, 1e-05
    %v81 = vrsqrt.pop %v79
    %v82 = vrsqrt.pop %v80
    %v83 = vsub.f32 %v52, %v69
    %v84 = vsub.f32 %v53, %v70
    %v85 = vmul.f32 %v83, %v81
    %v86 = vmul.f32 %v84, %v82
    %v87 = vld [vmem:[%s3] sm:$0x1]
    %v89 = vlaneseq
    %v90 = vshrl.u32 %v89, 7
    %v91 = vsub.s32 0, %v90
    %v92 = vrot.slane %v87, %v91
    %v94 = vmul.f32 %v85, %v92
    %v95 = vmul.f32 %v86, %v92
    %v96 = vld [vmem:[%s4] sm:$0x1]
    %v98 = vlaneseq
    %v99 = vshrl.u32 %v98, 7
    %v100 = vsub.s32 0, %v99
    %v101 = vrot.slane %v96, %v100
    %v103 = vadd.f32 %v94, %v101
    %v104 = vadd.f32 %v95, %v101
    %105 = vst.msk [vmem:[#allocation9] sm:$0xff] %vm54, %v103
    %106 = vst.msk [vmem:[#allocation9 + $0x8] sm:$0xff] %vm54, %v104
    // Predicated region
    $region26: #{tpu_custom_call.1} parent=1 // pred_check
      _
    $region27: #{tpu_custom_call.1} parent=1 // pred_check_branch
      %108 = sbr.rel (0) target = $region29
    $region28: #{tpu_custom_call.1} parent=1 // pred_region
      %s110 = ssub.s32 256, 256
      %111 = vsyncadd [#allocation6], %s110
      %s112 = sshll.u32 [#allocation9], 4
      %s113 = int_to_ptr.vmem [resolvable:$true] %s112
      %118 = dma.vmem_to_hbm [thread:$0]  %s113, 256, %s5, [#allocation6], 128, 128, 8
    $region29: #{tpu_custom_call.1} parent=1 // pred_fallthru
      _
    // Predicated region
    $region30: #{tpu_custom_call.1} parent=1 // pred_check
      _
    $region31: #{tpu_custom_call.1} parent=1 // pred_check_branch
      %120 = sbr.rel (0) target = $region33
    $region32: #{tpu_custom_call.1} parent=1 // pred_region
      %121 = dma.done [#allocation6], 256
    $region33: #{tpu_custom_call.1} parent=1 // pred_fallthru
      _
    %122 = vsyncpa [#allocation5], 1
    %123 = vsyncpa [#allocation8], 1
    %124 = vsyncpa [#allocation6], 1

</llo_original>
